<compile_context>
chip_gen: v7x
topology: tpu7x:2x2x1
jax: 0.10.0
libtpu: 0.0.40
codegen_flags: <defaults>
</compile_context>

<pallas_src>
import functools

import jax
import jax.numpy as jnp
from jax.experimental import pallas as pl
from jax.experimental.pallas import tpu as pltpu

# ----------------------------------------------------------------------------
# Module "hyper-parameters" (from DyRepDecoder.__init__)
# ----------------------------------------------------------------------------
EMBED_DIM = 32
NUM_SURV_SAMPLES = 4
TRAIN_TD_HR_MAX = 100.0
TRAIN_TD_MAX = 1000.0
TIME_TYPE = "hr"


# ----------------------------------------------------------------------------
# Pallas kernel: both Hawkes heads for a lane-tile of rows, vectorized [2, tm]
# ----------------------------------------------------------------------------
def _hawkes_fused_kernel(zsumT_ref, aux_ref, wT_ref, p_ref, out_ref, *,
                         inv_td_max):
    # zsumT_ref: [D, tm]  bf16  (VMEM)  zsum = z_u + z_v, rows on lanes
    # aux_ref:   [3, tm]  f32   (VMEM)  rows = [td, sel_head0, sel_head1]
    # wT_ref:    [16, D]  bf16  (VMEM)  rows 0/1 = Wsym head 0/1, rest zero
    # p_ref:     [10]     f32   (SMEM)  [b0,b1, ipsi0,ipsi1, psi0,psi1,
    #                                    a0,a1, wt0,wt1]  (ipsi = 1/(psi+1e-7))
    # out_ref:   [1, tm]  f32           sel0*lam0 + sel1*lam1
    g16 = jnp.dot(wT_ref[...], zsumT_ref[...],
                  preferred_element_type=jnp.float32)          # [16, tm]
    g = g16[0:2, :]                                            # [2, tm]

    # Per-head scalar params as [2, 1] columns (broadcast along lanes).
    head = jax.lax.broadcasted_iota(jnp.int32, (2, 1), 0)      # [[0],[1]]

    def per_head(i0, i1):
        return jnp.where(head == 0, p_ref[i0], p_ref[i1])      # [2, 1]

    b = per_head(0, 1)
    inv_psi = per_head(2, 3)
    psi = per_head(4, 5)
    alpha = per_head(6, 7)
    w_t = per_head(8, 9)

    td = aux_ref[0:1, :]          # [1, tm]
    sel = aux_ref[1:3, :]         # [2, tm]  (sel0 row, sel1 row)

    td_norm = td * inv_td_max                                  # [1, tm]
    gk = g + b + alpha * jnp.exp(-w_t * td_norm)               # [2, tm]
    gp = jnp.clip(gk * inv_psi, -75.0, 75.0)
    # psi * softplus(gp), stable form (== psi*(log(1+exp(-gp)) + gp)).
    lam = psi * (jnp.log1p(jnp.exp(-jnp.abs(gp))) + jnp.maximum(gp, 0.0))

    out_ref[...] = jnp.sum(sel * lam, axis=0, keepdims=True)   # [1, tm]


def _tile_rows(m, max_tile=8192):
    """Pad row count to a multiple of 128 lanes and pick a row tile.

    Large tiles (<= max_tile, sweep 8192..32768) amortize the ~0.35 us fixed
    per-grid-step overhead; the number of grid steps is forced to be even
    (>=2) whenever the problem spans more than one lane group so the
    "parallel" grid axis can shard across the two v7x TensorCores.
    """
    mp = ((max(m, 1) + 127) // 128) * 128
    if mp <= 128:
        return mp, mp                                # trivially small: 1 block
    n_blk = -(-mp // max_tile)
    n_blk = max(2, n_blk + (n_blk & 1))              # even, >= 2 steps
    tm = ((-(-mp // n_blk) + 127) // 128) * 128      # multiple of 128
    mp = ((mp + tm - 1) // tm) * tm
    return mp, tm


def fused_hawkes(params, zsum_t, td, sel0, sel1):
    """lambda = sel0*lam_head0 + sel1*lam_head1 for M rows, one pallas_call.

    zsum_t: [D, M] bf16 (rows-on-lanes), td/sel0/sel1: [M] f32.
    """
    D, M = zsum_t.shape
    Mp, tm = _tile_rows(M)
    pad = Mp - M

    zsum_t = jnp.pad(zsum_t, ((0, 0), (0, pad)))               # [D, Mp] bf16
    aux = jnp.pad(
        jnp.stack([td.astype(jnp.float32),
                   sel0.astype(jnp.float32),
                   sel1.astype(jnp.float32)], axis=0),
        ((0, 0), (0, pad)))                                    # [3, Mp] f32

    td_max = TRAIN_TD_HR_MAX if TIME_TYPE == "hr" else TRAIN_TD_MAX
    kernel = functools.partial(_hawkes_fused_kernel,
                               inv_td_max=float(1.0 / td_max))

    # TODO(synk): if an xprof trace on v5e still shows exposed DMA on the
    # zsum^T stream after these tile sizes, add pipeline_mode=pl.Buffered(3)
    # to the first BlockSpec below.
    out = pl.pallas_call(
        kernel,
        out_shape=jax.ShapeDtypeStruct((1, Mp), jnp.float32),
        grid=(Mp // tm,),
        in_specs=[
            pl.BlockSpec((D, tm), lambda i: (0, i)),     # zsum^T tile (bf16)
            pl.BlockSpec((3, tm), lambda i: (0, i)),     # [td, sel0, sel1]
            pl.BlockSpec((16, D), lambda i: (0, 0)),     # Wsym^T, resident
            pl.BlockSpec(memory_space=pltpu.MemorySpace.SMEM),  # scalar params
        ],
        out_specs=pl.BlockSpec((1, tm), lambda i: (0, i)),
        compiler_params=pltpu.CompilerParams(
            dimension_semantics=("parallel",)),
    )(zsum_t, aux, params["wsym_T"], params["p_vec"])
    return out[0, :M]


# ----------------------------------------------------------------------------
# Parameter init (deterministic, mirrors the module shapes)
# ----------------------------------------------------------------------------
def init_params(key, embed_dim=EMBED_DIM):
    k = jax.random.split(key, 6)
    bound = 1.0 / jnp.sqrt(2.0 * embed_dim)       # Linear.reset_parameters bound
    w0 = jax.random.uniform(k[0], (1, 2 * embed_dim), minval=-bound, maxval=bound)
    b0 = jax.random.uniform(k[1], (1,), minval=-bound, maxval=bound)
    w1 = jax.random.uniform(k[2], (1, 2 * embed_dim), minval=-bound, maxval=bound)
    b1 = jax.random.uniform(k[3], (1,), minval=-bound, maxval=bound)
    psi = 0.5 * jnp.ones((2,), jnp.float32)
    alpha = jax.random.uniform(k[4], (2,), jnp.float32)
    w_t = jax.random.uniform(k[5], (2,), jnp.float32)

    # Symmetry fold: 0.5*(omega_k([zu,zv]) + omega_k([zv,zu])) == (zu+zv)@Wsym_k + b_k
    wsym0 = 0.5 * (w0[0, :embed_dim] + w0[0, embed_dim:])
    wsym1 = 0.5 * (w1[0, :embed_dim] + w1[0, embed_dim:])
    wsym_t = jnp.concatenate(
        [jnp.stack([wsym0, wsym1], axis=0),
         jnp.zeros((14, embed_dim), jnp.float32)], axis=0
    ).astype(jnp.bfloat16)                                      # [16, D] bf16

    inv_psi = 1.0 / (psi + 1e-7)                                # host-side recip
    p_vec = jnp.concatenate([b0, b1, inv_psi, psi, alpha, w_t]).astype(jnp.float32)
    return {"wsym_T": wsym_t, "p_vec": p_vec}                   # p_vec: [10]


# ----------------------------------------------------------------------------
# Full forward pass (Hawkes branch, neg_dst-given / eval path)
# ----------------------------------------------------------------------------
def dyrep_decoder_forward(params, all_embeddings, assoc, src, pos_dst,
                          neg_dst_surv, neg_src_surv, neg_dst,
                          last_update, cur_time, et):
    S = NUM_SURV_SAMPLES
    B = src.shape[0]
    BS = B * S

    a_src = assoc[src]
    a_dst = assoc[pos_dst]
    a_neg = assoc[neg_dst]
    a_nds = assoc[neg_dst_surv]
    a_nss = assoc[neg_src_surv]

    a_src_rep = jnp.repeat(a_src, S)
    a_dst_rep = jnp.repeat(a_dst, S)
    ct_rep = jnp.repeat(cur_time, S)

    # Row layout of the fused kernel:
    #   [0,   B)        : (src, pos_dst)            head = et       -> lambda_uv
    #   [B,   2B)       : (src, neg_dst)            head = et       -> lambda_uv_neg
    #   [2B,  2B+BS)    : (src_rep, neg_dst_surv)   both heads sum  -> surv_u
    #   [2B+BS, 2B+2BS) : (neg_src_surv, dst_rep)   both heads sum  -> surv_v
    u_rows = jnp.concatenate([a_src, a_src, a_src_rep, a_nss])
    v_rows = jnp.concatenate([a_dst, a_neg, a_nds, a_dst_rep])
    ct_all = jnp.concatenate([cur_time, cur_time, ct_rep, ct_rep])

    # Transposed bf16 table ([D, N], N small) -> zsum^T gathered directly in
    # the rows-on-lanes layout; no [M, D] materialization or big transpose.
    # TODO(synk): if the XLA-side gather still dominates for very large M,
    # move it into the kernel via PrefetchScalarGridSpec with the (small)
    # embedding table resident in VMEM.
    emb_t = all_embeddings.astype(jnp.bfloat16).T                # [D, N] bf16
    zsum_t = emb_t[:, u_rows] + emb_t[:, v_rows]                 # [D, M] bf16

    td_all = ct_all - jnp.maximum(last_update[u_rows], last_update[v_rows])

    is1 = (et > 0).astype(jnp.float32)                           # et = (et_uv > 0)
    ones_bs = jnp.ones((BS,), jnp.float32)
    sel0 = jnp.concatenate([1.0 - is1, 1.0 - is1, ones_bs, ones_bs])
    sel1 = jnp.concatenate([is1, is1, ones_bs, ones_bs])

    lam = fused_hawkes(params, zsum_t, td_all, sel0, sel1)       # [M]

    lambda_uv = lam[:B]
    lambda_uv_neg = lam[B:2 * B]
    surv_u = lam[2 * B:2 * B + BS]
    surv_v = lam[2 * B + BS:]

    loss_lambda = -jnp.sum(jnp.log(lambda_uv + 1e-7))
    loss_surv_u = jnp.sum(surv_u) / S
    loss_surv_v = jnp.sum(surv_v) / S

    # conditional density (no-grad / eval path, neg_dst provided)
    s = surv_u.reshape(-1, S).mean(axis=-1) + surv_v.reshape(-1, S).mean(axis=-1)
    surv = jnp.exp(-s)
    cond_pos = lambda_uv * surv
    cond_neg = lambda_uv_neg * surv

    return (loss_lambda / B, loss_surv_u / B, loss_surv_v / B,
            (cond_pos, cond_neg))


# ----------------------------------------------------------------------------
# Demo
# ----------------------------------------------------------------------------
if __name__ == "__main__":
    key = jax.random.PRNGKey(0)
    kp, ke, kl, kt, ki = jax.random.split(key, 5)

    params = init_params(kp)

    N = 20                     # number of nodes
    B = 8                      # batch of events
    S = NUM_SURV_SAMPLES
    D = EMBED_DIM

    all_embeddings = jax.random.normal(ke, (N, D), jnp.float32)
    assoc = jnp.arange(N, dtype=jnp.int32)     # node id -> embedding row

    k1, k2, k3, k4, k5, k6 = jax.random.split(ki, 6)
    src = jax.random.randint(k1, (B,), 0, N, dtype=jnp.int32)
    pos_dst = jax.random.randint(k2, (B,), 0, N, dtype=jnp.int32)
    neg_dst = jax.random.randint(k3, (B,), 0, N, dtype=jnp.int32)
    neg_dst_surv = jax.random.randint(k4, (B * S,), 0, N, dtype=jnp.int32)
    neg_src_surv = jax.random.randint(k5, (B * S,), 0, N, dtype=jnp.int32)
    et = jax.random.randint(k6, (B,), 0, 2, dtype=jnp.int32)

    last_update = jax.random.uniform(kl, (N,), jnp.float32, 0.0, 10.0)
    cur_time = 10.0 + jax.random.uniform(kt, (B,), jnp.float32, 0.0, 5.0)

    fwd = jax.jit(functools.partial(dyrep_decoder_forward, params))
    out = fwd(all_embeddings, assoc, src, pos_dst, neg_dst_surv,
              neg_src_surv, neg_dst, last_update, cur_time, et)
    jax.block_until_ready(out)
    print("KERNEL_OK")
</pallas_src>

<mosaic_0001>
module attributes {stable_mosaic.version = 11 : i64} {
  func.func @_hawkes_fused_kernel(%arg0: i32, %arg1: memref<32x128xbf16, #tpu.memory_space<vmem>>, %arg2: memref<3x128xf32, #tpu.memory_space<vmem>>, %arg3: memref<16x32xbf16, #tpu.memory_space<vmem>>, %arg4: memref<10xf32, #tpu.memory_space<smem>>, %arg5: memref<1x128xf32, #tpu.memory_space<vmem>>) attributes {dimension_semantics = [#tpu.dimension_semantics<parallel>], iteration_bounds = array<i64: 1>, scalar_prefetch = 0 : i64, scratch_operands = 0 : i64, tpu.core_type = #tpu.core_type<tc>, window_params = [{transform_indices = @transform_0, window_bounds = array<i64: 32, 128>}, {transform_indices = @transform_1, window_bounds = array<i64: 3, 128>}, {pipeline_mode = #tpu.pipeline_mode<synchronous>, transform_indices = @transform_2, window_bounds = array<i64: 16, 32>}, {transform_indices = @transform_3, window_bounds = array<i64: 10>}, {transform_indices = @transform_4, window_bounds = array<i64: 1, 128>}]} {
    %c0 = arith.constant 0 : index
    %c0_0 = arith.constant 0 : index
    %0 = vector.load %arg3[%c0, %c0_0] : memref<16x32xbf16, #tpu.memory_space<vmem>>, vector<16x32xbf16>
    %c0_1 = arith.constant 0 : index
    %c0_2 = arith.constant 0 : index
    %1 = vector.load %arg1[%c0_1, %c0_2] : memref<32x128xbf16, #tpu.memory_space<vmem>>, vector<32x128xbf16>
    %cst = arith.constant dense<0.000000e+00> : vector<16x128xf32>
    %2 = tpu.matmul %0, %1, %cst {dimension_numbers = #tpu.dot_dimension_numbers<[1], [0], [0], [1], [0, 0, 1, 1], [], []>} : vector<16x32xbf16>, vector<32x128xbf16>, vector<16x128xf32> -> vector<16x128xf32>
    %3 = vector.extract_strided_slice %2 {offsets = [0, 0], sizes = [2, 128], strides = [1, 1]} : vector<16x128xf32> to vector<2x128xf32>
    %4 = tpu.iota {dimensions = array<i32: 0>} : vector<2x1xi32>
    %c0_i32 = arith.constant 0 : i32
    %5 = vector.broadcast %c0_i32 : i32 to vector<2x1xi32>
    %6 = arith.cmpi eq, %4, %5 : vector<2x1xi32>
    %c0_3 = arith.constant 0 : index
    %7 = memref.load %arg4[%c0_3] : memref<10xf32, #tpu.memory_space<smem>>
    %c1 = arith.constant 1 : index
    %8 = memref.load %arg4[%c1] : memref<10xf32, #tpu.memory_space<smem>>
    %9 = vector.broadcast %7 : f32 to vector<2x1xf32>
    %10 = vector.broadcast %8 : f32 to vector<2x1xf32>
    %11 = arith.select %6, %9, %10 : vector<2x1xi1>, vector<2x1xf32>
    %c0_i32_4 = arith.constant 0 : i32
    %12 = vector.broadcast %c0_i32_4 : i32 to vector<2x1xi32>
    %13 = arith.cmpi eq, %4, %12 : vector<2x1xi32>
    %c2 = arith.constant 2 : index
    %14 = memref.load %arg4[%c2] : memref<10xf32, #tpu.memory_space<smem>>
    %c3 = arith.constant 3 : index
    %15 = memref.load %arg4[%c3] : memref<10xf32, #tpu.memory_space<smem>>
    %16 = vector.broadcast %14 : f32 to vector<2x1xf32>
    %17 = vector.broadcast %15 : f32 to vector<2x1xf32>
    %18 = arith.select %13, %16, %17 : vector<2x1xi1>, vector<2x1xf32>
    %c0_i32_5 = arith.constant 0 : i32
    %19 = vector.broadcast %c0_i32_5 : i32 to vector<2x1xi32>
    %20 = arith.cmpi eq, %4, %19 : vector<2x1xi32>
    %c4 = arith.constant 4 : index
    %21 = memref.load %arg4[%c4] : memref<10xf32, #tpu.memory_space<smem>>
    %c5 = arith.constant 5 : index
    %22 = memref.load %arg4[%c5] : memref<10xf32, #tpu.memory_space<smem>>
    %23 = vector.broadcast %21 : f32 to vector<2x1xf32>
    %24 = vector.broadcast %22 : f32 to vector<2x1xf32>
    %25 = arith.select %20, %23, %24 : vector<2x1xi1>, vector<2x1xf32>
    %c0_i32_6 = arith.constant 0 : i32
    %26 = vector.broadcast %c0_i32_6 : i32 to vector<2x1xi32>
    %27 = arith.cmpi eq, %4, %26 : vector<2x1xi32>
    %c6 = arith.constant 6 : index
    %28 = memref.load %arg4[%c6] : memref<10xf32, #tpu.memory_space<smem>>
    %c7 = arith.constant 7 : index
    %29 = memref.load %arg4[%c7] : memref<10xf32, #tpu.memory_space<smem>>
    %30 = vector.broadcast %28 : f32 to vector<2x1xf32>
    %31 = vector.broadcast %29 : f32 to vector<2x1xf32>
    %32 = arith.select %27, %30, %31 : vector<2x1xi1>, vector<2x1xf32>
    %c0_i32_7 = arith.constant 0 : i32
    %33 = vector.broadcast %c0_i32_7 : i32 to vector<2x1xi32>
    %34 = arith.cmpi eq, %4, %33 : vector<2x1xi32>
    %c8 = arith.constant 8 : index
    %35 = memref.load %arg4[%c8] : memref<10xf32, #tpu.memory_space<smem>>
    %c9 = arith.constant 9 : index
    %36 = memref.load %arg4[%c9] : memref<10xf32, #tpu.memory_space<smem>>
    %37 = vector.broadcast %35 : f32 to vector<2x1xf32>
    %38 = vector.broadcast %36 : f32 to vector<2x1xf32>
    %39 = arith.select %34, %37, %38 : vector<2x1xi1>, vector<2x1xf32>
    %c0_8 = arith.constant 0 : index
    %c0_9 = arith.constant 0 : index
    %40 = vector.load %arg2[%c0_8, %c0_9] : memref<3x128xf32, #tpu.memory_space<vmem>>, vector<1x128xf32>
    %c1_10 = arith.constant 1 : index
    %c0_11 = arith.constant 0 : index
    %41 = vector.load %arg2[%c1_10, %c0_11] : memref<3x128xf32, #tpu.memory_space<vmem>>, vector<2x128xf32>
    %cst_12 = arith.constant 0.00999999977 : f32
    %42 = vector.broadcast %cst_12 : f32 to vector<1x128xf32>
    %43 = arith.mulf %40, %42 : vector<1x128xf32>
    %44 = vector.broadcast %11 : vector<2x1xf32> to vector<2x128xf32>
    %45 = arith.addf %3, %44 : vector<2x128xf32>
    %cst_13 = arith.constant 0.000000e+00 : f32
    %46 = vector.broadcast %cst_13 : f32 to vector<2x1xf32>
    %47 = arith.subf %46, %39 : vector<2x1xf32>
    %48 = vector.broadcast %47 : vector<2x1xf32> to vector<2x128xf32>
    %49 = vector.broadcast %43 : vector<1x128xf32> to vector<2x128xf32>
    %50 = arith.mulf %48, %49 : vector<2x128xf32>
    %51 = math.exp %50 : vector<2x128xf32>
    %52 = vector.broadcast %32 : vector<2x1xf32> to vector<2x128xf32>
    %53 = arith.mulf %52, %51 : vector<2x128xf32>
    %54 = arith.addf %45, %53 : vector<2x128xf32>
    %55 = vector.broadcast %18 : vector<2x1xf32> to vector<2x128xf32>
    %56 = arith.mulf %54, %55 : vector<2x128xf32>
    %cst_14 = arith.constant -7.500000e+01 : f32
    %cst_15 = arith.constant 7.500000e+01 : f32
    %57 = vector.broadcast %cst_14 : f32 to vector<2x128xf32>
    %58 = arith.maximumf %57, %56 : vector<2x128xf32>
    %59 = vector.broadcast %cst_15 : f32 to vector<2x128xf32>
    %60 = arith.minimumf %59, %58 : vector<2x128xf32>
    %61 = math.absf %60 : vector<2x128xf32>
    %cst_16 = arith.constant 0.000000e+00 : f32
    %62 = vector.broadcast %cst_16 : f32 to vector<2x128xf32>
    %63 = arith.subf %62, %61 : vector<2x128xf32>
    %64 = math.exp %63 : vector<2x128xf32>
    %65 = math.log1p %64 : vector<2x128xf32>
    %cst_17 = arith.constant 0.000000e+00 : f32
    %66 = vector.broadcast %cst_17 : f32 to vector<2x128xf32>
    %67 = arith.maximumf %60, %66 : vector<2x128xf32>
    %68 = arith.addf %65, %67 : vector<2x128xf32>
    %69 = vector.broadcast %25 : vector<2x1xf32> to vector<2x128xf32>
    %70 = arith.mulf %69, %68 : vector<2x128xf32>
    %71 = arith.mulf %41, %70 : vector<2x128xf32>
    %cst_18 = arith.constant dense<0.000000e+00> : vector<128xf32>
    %72 = vector.multi_reduction <add>, %71, %cst_18 [0] : vector<2x128xf32> to vector<128xf32>
    %73 = vector.shape_cast %72 : vector<128xf32> to vector<1x128xf32>
    %c0_19 = arith.constant 0 : index
    %c0_20 = arith.constant 0 : index
    %74 = vector.load %arg5[%c0_19, %c0_20] : memref<1x128xf32, #tpu.memory_space<vmem>>, vector<1x128xf32>
    tpu.vector_store %arg5[%c0_19, %c0_20], %73 {strides = array<i32>} : memref<1x128xf32, #tpu.memory_space<vmem>>, vector<1x128xf32>,
    return
  }
  func.func @transform_0(%arg0: i32) -> (i32, i32) {
    %c0_i32 = arith.constant 0 : i32
    %c0_i32_0 = arith.constant 0 : i32
    return %c0_i32, %arg0 : i32, i32
  }
  func.func @transform_1(%arg0: i32) -> (i32, i32) {
    %c0_i32 = arith.constant 0 : i32
    %c0_i32_0 = arith.constant 0 : i32
    return %c0_i32, %arg0 : i32, i32
  }
  func.func @transform_2(%arg0: i32) -> (i32, i32) {
    %c0_i32 = arith.constant 0 : i32
    %c0_i32_0 = arith.constant 0 : i32
    %c0_i32_1 = arith.constant 0 : i32
    return %c0_i32, %c0_i32_0 : i32, i32
  }
  func.func @transform_3(%arg0: i32) -> i32 {
    %c0_i32 = arith.constant 0 : i32
    %c0_i32_0 = arith.constant 0 : i32
    return %c0_i32 : i32
  }
  func.func @transform_4(%arg0: i32) -> (i32, i32) {
    %c0_i32 = arith.constant 0 : i32
    %c0_i32_0 = arith.constant 0 : i32
    return %c0_i32, %arg0 : i32, i32
  }
}

</mosaic_0001>

<llo_original>
// kernel: dyrep_decoder_forward.1
$region0: #{dyrep_decoder_forward.1}
  #allocation0 [shape = 'u32[]', space=smem, size = 0x4, offset = 0x4, fixed_abs, tag = 'smem constant byte address 0x4 - core index']
  #allocation1 [shape = 'u32[144,128]{1,0:T(1,128)}', space=vmem, size = 0x12000, scoped, tag = 'internal scratch']
  %s0 = inlined_call_operand.vmem [shape: bf16[32,128], index: 0, kind: input, shape index: {}]
  %s1 = inlined_call_operand.vmem [shape: f32[3,128], index: 1, kind: input, shape index: {}]
  %s2 = inlined_call_operand.vmem [shape: bf16[16,32], index: 2, kind: input, shape index: {}]
  %s3 = inlined_call_operand.vmem [shape: f32[10], index: 3, kind: input, shape index: {}]
  %s4 = inlined_call_operand.vmem [shape: f32[1,128], index: 4, kind: output, shape index: {}]
  %s5 = sld [smem:[#allocation0]]
  $region30: #{dyrep_decoder_forward.1} parent=0
    _
  %s7 = ssub.s32 1, %s5
  %s8 = scalar_select 0, %s7, %s5
  $region1: #{dyrep_decoder_forward.1} parent=0
    #allocation2 [shape = 'u8[512]{0}', space=smem, size = 0x200, scoped, tag = 'input window, operand 3, single buffered']
    #allocation3 [shape = 's32[1]{0}', space=sflag, size = 0x4, scoped, tag = 'scoped memory for dyrep_decoder_forward.1']
    %9 = vsyncpa [#allocation3], 0
    // Predicated region
    $region2: #{dyrep_decoder_forward.1} parent=1 // pred_check
      _
    $region3: #{dyrep_decoder_forward.1} parent=1 // pred_check_branch
      %11 = sbr.rel (0) target = $region5
    $region4: #{dyrep_decoder_forward.1} parent=1 // pred_region
      _
    $region5: #{dyrep_decoder_forward.1} parent=1 // pred_fallthru
      _
    // Predicated region
    $region6: #{dyrep_decoder_forward.1} parent=1 // pred_check
      _
    $region7: #{dyrep_decoder_forward.1} parent=1 // pred_check_branch
      %13 = sbr.rel (0) target = $region9
    $region8: #{dyrep_decoder_forward.1} parent=1 // pred_region
      _
    $region9: #{dyrep_decoder_forward.1} parent=1 // pred_fallthru
      _
    // Predicated region
    $region10: #{dyrep_decoder_forward.1} parent=1 // pred_check
      _
    $region11: #{dyrep_decoder_forward.1} parent=1 // pred_check_branch
      %15 = sbr.rel (0) target = $region13
    $region12: #{dyrep_decoder_forward.1} parent=1 // pred_region
      _
    $region13: #{dyrep_decoder_forward.1} parent=1 // pred_fallthru
      _
    // Predicated region
    $region14: #{dyrep_decoder_forward.1} parent=1 // pred_check
      _
    $region15: #{dyrep_decoder_forward.1} parent=1 // pred_check_branch
      %17 = sbr.rel (0) target = $region17
    $region16: #{dyrep_decoder_forward.1} parent=1 // pred_region
      %s19 = ssub.s32 16, 16
      %20 = vsyncadd [#allocation3], %s19
      %s22 = sshll.u32 %s3, 4
      %s23 = int_to_ptr.vmem [resolvable:$true] %s22
      %25 = dma.vmem_to_smem %s23, 16, [#allocation2], [#allocation3]
    $region17: #{dyrep_decoder_forward.1} parent=1 // pred_fallthru
      _
    // Predicated region
    $region18: #{dyrep_decoder_forward.1} parent=1 // pred_check
      _
    $region19: #{dyrep_decoder_forward.1} parent=1 // pred_check_branch
      %27 = sbr.rel (0) target = $region21
    $region20: #{dyrep_decoder_forward.1} parent=1 // pred_region
      %28 = dma.done [#allocation3], 16
    $region21: #{dyrep_decoder_forward.1} parent=1 // pred_fallthru
      _
    %29 = sfence
    %v31 = vld [vmem:[%s2] sm:$0xf]
    %v32 = vld [vmem:[%s2 + $0x4] sm:$0xf]
    %v33 = vld [vmem:[%s0] sm:$0xf]
    %v34 = vld [vmem:[%s0 + $0x4] sm:$0xf]
    %v35 = vld [vmem:[%s0 + $0x8] sm:$0xf]
    %v36 = vld [vmem:[%s0 + $0xc] sm:$0xf]
    %v39 = vunpack.c.l.b16 %v31
    %v40 = vunpack.c.l.b16 %v32
    %v41 = vpack.c.b16 %v40, %v39
    %v46 = vunpack.c.l.b16 %v33
    %v47 = vunpack.c.l.b16 %v34
    %v48 = vunpack.c.l.b16 %v35
    %v49 = vunpack.c.l.b16 %v36
    %v50 = vpack.c.b16 %v47, %v46
    %v51 = vpack.c.b16 %v49, %v48
    %vm54 = vcmask 261120
    %v56 = vsel %vm54, %v41, 0
    %58 = vmatprep.subr.bf16.mxu0 0
    %59 = vmatpush1.bf16.msra.mxu0 %v50
    %60 = vmatprep.subr.bf16.mxu0 0
    %61 = vmatpush1.bf16.msra.mxu0 %v51
    %62 = vmatprep.subr.bf16.mxu0 0
    %63 = vmatpush1.bf16.msra.mxu0 0
    %64 = vmatprep.subr.bf16.mxu0 0
    %65 = vmatpush1.bf16.msra.mxu0 0
    %66 = vmatprep.subr.bf16.mxu0 0
    %67 = vmatpush1.bf16.msra.mxu0 0
    %68 = vmatprep.subr.bf16.mxu0 0
    %69 = vmatpush1.bf16.msra.mxu0 0
    %70 = vmatprep.subr.bf16.mxu0 0
    %71 = vmatpush1.bf16.msra.mxu0 0
    %72 = vmatprep.subr.bf16.mxu0 0
    %73 = vmatpush1.bf16.msra.mxu0 0
    %74 = vmatprep.subr.bf16.mxu0 0
    %75 = vmatpush1.bf16.msra.mxu0 0
    %76 = vmatprep.subr.bf16.mxu0 0
    %77 = vmatpush1.bf16.msra.mxu0 0
    %78 = vmatprep.subr.bf16.mxu0 0
    %79 = vmatpush1.bf16.msra.mxu0 0
    %80 = vmatprep.subr.bf16.mxu0 0
    %81 = vmatpush1.bf16.msra.mxu0 0
    %82 = vmatprep.subr.bf16.mxu0 0
    %83 = vmatpush1.bf16.msra.mxu0 0
    %84 = vmatprep.subr.bf16.mxu0 0
    %85 = vmatpush1.bf16.msra.mxu0 0
    %86 = vmatprep.subr.bf16.mxu0 0
    %87 = vmatpush1.bf16.msra.mxu0 0
    %88 = vmatprep.subr.bf16.mxu0 0
    %89 = vmatpush1.bf16.msra.mxu0 0
    %90 = vmatprep.mubr.bf16.mxu0 0
    %91 = vmatmul.mubr.bf16.gmra.mrb[0].mxu0 %v56
    %v92 = vpop.f32.mrb[0].mxu0
    %v93 = vadd.f32 0.0, %v92
    %v94 = vpop.f32.mrb[0].mxu0
    %v95 = vpop.f32.mrb[0].mxu0
    %v96 = vpop.f32.mrb[0].mxu0
    %97 = vdwg.mxu0
    %v98 = vlaneseq
    %v99 = vshrl.u32 %v98, 7
    %vm100 = vcmp.eq.s32.totalorder %v99, 0
    %s101 = sld [smem:[#allocation2]]
    %s102 = sld [smem:[#allocation2 + $0x1]]
    %v103 = vstv %s101
    %v104 = vstv %s102
    %v105 = vsel %vm100, %v103, %v104
    %s106 = sld [smem:[#allocation2 + $0x2]]
    %s107 = sld [smem:[#allocation2 + $0x3]]
    %v108 = vstv %s106
    %v109 = vstv %s107
    %v110 = vsel %vm100, %v108, %v109
    %s111 = sld [smem:[#allocation2 + $0x4]]
    %s112 = sld [smem:[#allocation2 + $0x5]]
    %v113 = vstv %s111
    %v114 = vstv %s112
    %v115 = vsel %vm100, %v113, %v114
    %s116 = sld [smem:[#allocation2 + $0x6]]
    %s117 = sld [smem:[#allocation2 + $0x7]]
    %v118 = vstv %s116
    %v119 = vstv %s117
    %v120 = vsel %vm100, %v118, %v119
    %s121 = sld [smem:[#allocation2 + $0x8]]
    %s122 = sld [smem:[#allocation2 + $0x9]]
    %v123 = vstv %s121
    %v124 = vstv %s122
    %v125 = vsel %vm100, %v123, %v124
    %v126 = vld [vmem:[%s1] sm:$0x1]
    %v127 = vld [vmem:[%s1 + $0x1] sm:$0x3]
    %v128 = vmul.f32 %v126, 0.01
    %v129 = vadd.f32 %v93, %v105
    %v130 = vsub.f32 0.0, %v125
    %v131 = vlaneseq
    %v132 = vshrl.u32 %v131, 7
    %v133 = vsub.s32 0, %v132
    %v134 = vrot.slane %v128, %v133
    %v135 = vmul.f32 %v130, %v134
    %v136 = vmul.f32 %v135, 1.442695
    %v137 = vpow.pop %v136
    %v138 = vmul.f32 %v120, %v137
    %v139 = vadd.f32 %v129, %v138
    %v140 = vmul.f32 %v139, %v110
    %v141 = vmax.f32 %v140, -75.0
    %v142 = vmin.f32 %v141, 75.0
    %v143 = vand.u32 2147483647, %v142
    %v144 = vsub.f32 0.0, %v143
    %v145 = vmul.f32 %v144, 1.442695
    %v146 = vpow.pop %v145
    %v147 = vadd.f32 %v146, 1.0
    %v148 = vlog2.pop %v147
    %v149 = vmul.f32 %v148, 0.6931472
    %v150 = vmul.f32 -0.5, %v146
    %v151 = vadd.f32 %v150, 1.0
    %v152 = vmul.f32 %v151, %v146
    %v153 = vand.u32 2147483647, %v146
    %vm154 = vcmp.lt.f32.partialorder %v153, 0.0004427343
    %v155 = vsel %vm154, %v152, %v149
    %v156 = vmax.f32 %v142, 0.0
    %v157 = vadd.f32 %v155, %v156
    %v158 = vmul.f32 %v115, %v157
    %v159 = vmul.f32 %v127, %v158
    %vm160 = vcmask 1041408
    %v161 = vsel %vm160, %v159, 0.0
    %v162 = vrot.slane %v161, 4
    %v163 = vadd.f32 %v161, %v162
    %v164 = vrot.slane %v163, 2
    %v165 = vadd.f32 %v163, %v164
    %v166 = vrot.slane %v165, 1
    %v167 = vadd.f32 %v165, %v166
    %168 = vst [vmem:[%s4] sm:$0x1] %v167
    // Predicated region
    $region22: #{dyrep_decoder_forward.1} parent=1 // pred_check
      _
    $region23: #{dyrep_decoder_forward.1} parent=1 // pred_check_branch
      %170 = sbr.rel (0) target = $region25
    $region24: #{dyrep_decoder_forward.1} parent=1 // pred_region
      _
    $region25: #{dyrep_decoder_forward.1} parent=1 // pred_fallthru
      _
    // Predicated region
    $region26: #{dyrep_decoder_forward.1} parent=1 // pred_check
      _
    $region27: #{dyrep_decoder_forward.1} parent=1 // pred_check_branch
      %172 = sbr.rel (0) target = $region29
    $region28: #{dyrep_decoder_forward.1} parent=1 // pred_region
      _
    $region29: #{dyrep_decoder_forward.1} parent=1 // pred_fallthru
      _
    %173 = vsyncpa [#allocation3], 1

</llo_original>
